<compile_context>
chip_gen: v7x
topology: tpu7x:2x2x1
jax: 0.10.0
libtpu: 0.0.40
codegen_flags: <defaults>
</compile_context>

<pallas_src>
import functools

import jax
import jax.numpy as jnp
from jax.experimental import pallas as pl
from jax.experimental.pallas import tpu as pltpu


def _vmem_capacity_bytes():
    try:
        cap = int(pltpu.get_tpu_info().vmem_capacity_bytes)
        if cap > 0:
            return cap
    except Exception:
        pass
    return 64 << 20  # conservative fallback (v7x per-TC VMEM)


def _choose_bt(B, per_sample_bytes, vmem_budget, target_block_bytes,
               min_steps=8, min_block_bytes=512 << 10):
    """Pick a batch tile Bt (divisor of B):
       - block (5x buffered) fits in the VMEM budget,
       - block is at most ~target_block_bytes,
       - grid has >= min_steps steps when that doesn't shrink blocks below
         ~min_block_bytes,
       - prefer an even number of grid steps (v7x: 2 TensorCores)."""
    per_sample_bytes = max(1, per_sample_bytes)
    fit = max(1, vmem_budget // max(1, 5 * per_sample_bytes))
    want = max(1, target_block_bytes // per_sample_bytes)
    bt_cap = max(1, min(fit, want, B))

    # Deepen the pipeline: aim for >= min_steps grid steps ...
    if B >= min_steps:
        cap_for_steps = B // min_steps
    elif B >= 2:
        cap_for_steps = max(1, B // 2)
    else:
        cap_for_steps = 1
    # ... but do not shrink blocks below ~min_block_bytes just to add steps.
    floor_bt = (min_block_bytes + per_sample_bytes - 1) // per_sample_bytes
    cap_for_steps = max(cap_for_steps, min(floor_bt, max(1, B // 2)))
    bt_cap = min(bt_cap, max(1, cap_for_steps))

    # Largest divisor of B that fits the cap.
    best = 1
    for bt in range(bt_cap, 0, -1):
        if B % bt == 0:
            best = bt
            break
    # Prefer an even number of grid steps if another divisor allows it.
    if (B // best) % 2 == 1:
        for bt in range(best - 1, 0, -1):
            if B % bt == 0 and (B // bt) % 2 == 0:
                best = bt
                break
    return best


def se_block_kernel(x_ref, w1_ref, b1_ref, w2_ref, b2_ref, o_ref, *,
                    inv_hw, use_mxu):
    # x_ref block: (Bt, C, HW) -- channels on sublanes, spatial on lanes.
    x = x_ref[...]                                                # native dtype

    # Squeeze: spatial mean, accumulated in f32 (no full-block f32 copy).
    pooled = jnp.sum(x, axis=-1, dtype=jnp.float32) * inv_hw      # (Bt, C)

    b1 = b1_ref[...]                                              # (1, mid)
    b2 = b2_ref[...]                                              # (1, C)

    if use_mxu:
        # Large channel configs: use the otherwise idle MXU.
        # w1_ref: (C, mid), w2_ref: (mid, C)
        h = jnp.dot(pooled, w1_ref[...],
                    preferred_element_type=jnp.float32) + b1      # (Bt, mid)
        h = jnp.maximum(h, 0.0)
        s = jnp.dot(h, w2_ref[...],
                    preferred_element_type=jnp.float32) + b2      # (Bt, C)
    else:
        # Small mid: broadcast-multiply + cross-lane sum on VPU/XLU.
        # w1_ref: (mid, C), w2_ref: (C, mid)
        h = jnp.sum(pooled[:, None, :] * w1_ref[...][None, :, :],
                    axis=-1) + b1                                 # (Bt, mid)
        h = jnp.maximum(h, 0.0)
        s = jnp.sum(h[:, None, :] * w2_ref[...][None, :, :],
                    axis=-1) + b2                                 # (Bt, C)

    s = jax.nn.sigmoid(s)                                         # (Bt, C) f32

    # Excite: channel-wise scale in the native dtype; full-block store.
    o_ref[...] = x * s.astype(x.dtype)[:, :, None]


def se_block(x_nchw, w1, b1, w2, b2):
    """x_nchw: (B, C, H, W). Weights: w1 (mid, C), b1 (mid, 1), w2 (C, mid),
    b2 (C, 1). Returns (B, C, H, W) matching the PyTorch SEBlock forward."""
    B, C, H, W = x_nchw.shape
    HW = H * W
    mid = w1.shape[0]
    dtype = x_nchw.dtype
    itemsize = jnp.dtype(dtype).itemsize

    x = x_nchw.reshape(B, C, HW)          # no padding: full-extent blocks

    use_mxu = (C * mid) >= 4096
    if use_mxu:
        w1k = w1.astype(jnp.float32).T    # (C, mid)
        w2k = w2.astype(jnp.float32).T    # (mid, C)
    else:
        w1k = w1.astype(jnp.float32)      # (mid, C)
        w2k = w2.astype(jnp.float32)      # (C, mid)
    b1k = b1.astype(jnp.float32).reshape(1, mid)
    b2k = b2.astype(jnp.float32).reshape(1, C)

    # Generation-aware VMEM budget / target block size.
    cap = _vmem_capacity_bytes()
    budget = int(cap * 3 // 4)                                 # ~0.75x capacity
    target_block_bytes = (6 << 20) if cap >= (96 << 20) else (3 << 20)

    per_sample_bytes = C * HW * itemsize
    # TODO(synk): add a spatially-tiled (accumulator) fallback for the case
    # where a single sample (C*HW) exceeds the per-core VMEM budget.
    Bt = _choose_bt(B, per_sample_bytes, budget, target_block_bytes)
    grid = (B // Bt,)

    block_bytes = Bt * per_sample_bytes
    # 2x-in + 2x-out double-buffered + one block of in-kernel temp headroom
    # + params/intermediates; clamp to the capacity-derived budget.
    vmem_limit = int(min(budget, max(8 << 20, 5 * block_bytes + (1 << 20))))

    kern = functools.partial(se_block_kernel,
                             inv_hw=float(1.0 / HW), use_mxu=use_mxu)

    out = pl.pallas_call(
        kern,
        out_shape=jax.ShapeDtypeStruct((B, C, HW), dtype),
        grid_spec=pltpu.PrefetchScalarGridSpec(
            num_scalar_prefetch=0,
            grid=grid,
            in_specs=[
                pl.BlockSpec((Bt, C, HW), lambda b: (b, 0, 0)),
                pl.BlockSpec(w1k.shape, lambda b: (0, 0)),
                pl.BlockSpec(b1k.shape, lambda b: (0, 0)),
                pl.BlockSpec(w2k.shape, lambda b: (0, 0)),
                pl.BlockSpec(b2k.shape, lambda b: (0, 0)),
            ],
            out_specs=pl.BlockSpec((Bt, C, HW), lambda b: (b, 0, 0)),
        ),
        compiler_params=pltpu.CompilerParams(
            dimension_semantics=("parallel",),
            vmem_limit_bytes=vmem_limit),
    )(x, w1k, b1k, w2k, b2k)

    return out.reshape(B, C, H, W)


def reference_se_block(x, w1, b1, w2, b2):
    # Pure-JAX reference matching the PyTorch SEBlock forward.
    pooled = jnp.mean(x, axis=(2, 3))                       # (B, C)
    h = jnp.maximum(pooled @ w1.T + b1[:, 0], 0.0)          # (B, mid)
    s = jax.nn.sigmoid(h @ w2.T + b2[:, 0])                 # (B, C)
    return x * s[:, :, None, None]


def _make_params(key, C, reduction):
    mid = max(1, C // reduction)
    k1, kb1, k2, kb2 = jax.random.split(key, 4)
    w1 = jax.random.normal(k1, (mid, C), dtype=jnp.float32) * 0.1
    b1 = jax.random.normal(kb1, (mid, 1), dtype=jnp.float32) * 0.1
    w2 = jax.random.normal(k2, (C, mid), dtype=jnp.float32) * 0.1
    b2 = jax.random.normal(kb2, (C, 1), dtype=jnp.float32) * 0.1
    return w1, b1, w2, b2


if __name__ == "__main__":
    key = jax.random.PRNGKey(0)
    kx1, kp1, kx2, kp2, kx3, kp3 = jax.random.split(key, 6)

    # Config 1: aligned shapes, multi-sample blocks (Bt=2, grid=(2,)).
    B, C, H, W, reduction = 4, 32, 16, 16, 16
    x = jax.random.normal(kx1, (B, C, H, W), dtype=jnp.float32)
    w1, b1, w2, b2 = _make_params(kp1, C, reduction)
    out = jax.block_until_ready(se_block(x, w1, b1, w2, b2))
    ref = reference_se_block(x, w1, b1, w2, b2)
    assert out.shape == (B, C, H, W)
    assert jnp.allclose(out, ref, atol=1e-5, rtol=1e-5), "mismatch (aligned)"

    # Config 2: non-aligned channels/spatial (C=24, HW=196), no padding needed.
    B2, C2, H2, W2, red2 = 3, 24, 14, 14, 8
    x2 = jax.random.normal(kx2, (B2, C2, H2, W2), dtype=jnp.float32)
    w1b, b1b, w2b, b2b = _make_params(kp2, C2, red2)
    out2 = jax.block_until_ready(se_block(x2, w1b, b1b, w2b, b2b))
    ref2 = reference_se_block(x2, w1b, b1b, w2b, b2b)
    assert out2.shape == (B2, C2, H2, W2)
    assert jnp.allclose(out2, ref2, atol=1e-5, rtol=1e-5), "mismatch (unaligned)"

    # Config 3: large-channel config exercising the MXU excitation path.
    B3, C3, H3, W3, red3 = 2, 512, 8, 8, 8
    x3 = jax.random.normal(kx3, (B3, C3, H3, W3), dtype=jnp.float32)
    w1c, b1c, w2c, b2c = _make_params(kp3, C3, red3)
    out3 = jax.block_until_ready(se_block(x3, w1c, b1c, w2c, b2c))
    ref3 = reference_se_block(x3, w1c, b1c, w2c, b2c)
    assert out3.shape == (B3, C3, H3, W3)
    assert jnp.allclose(out3, ref3, atol=1e-5, rtol=1e-5), "mismatch (mxu path)"

    print("KERNEL_OK")
</pallas_src>

<mosaic_0001>
module attributes {stable_mosaic.version = 11 : i64} {
  func.func @se_block_kernel(%arg0: i32, %arg1: memref<2x32x256xf32, #tpu.memory_space<vmem>>, %arg2: memref<2x32xf32, #tpu.memory_space<vmem>>, %arg3: memref<1x2xf32, #tpu.memory_space<vmem>>, %arg4: memref<32x2xf32, #tpu.memory_space<vmem>>, %arg5: memref<1x32xf32, #tpu.memory_space<vmem>>, %arg6: memref<2x32x256xf32, #tpu.memory_space<vmem>>) attributes {dimension_semantics = [#tpu.dimension_semantics<parallel>], iteration_bounds = array<i64: 2>, scalar_prefetch = 0 : i64, scratch_operands = 0 : i64, tpu.core_type = #tpu.core_type<tc>, window_params = [{transform_indices = @transform_0, window_bounds = array<i64: 2, 32, 256>}, {pipeline_mode = #tpu.pipeline_mode<synchronous>, transform_indices = @transform_1, window_bounds = array<i64: 2, 32>}, {pipeline_mode = #tpu.pipeline_mode<synchronous>, transform_indices = @transform_2, window_bounds = array<i64: 1, 2>}, {pipeline_mode = #tpu.pipeline_mode<synchronous>, transform_indices = @transform_3, window_bounds = array<i64: 32, 2>}, {pipeline_mode = #tpu.pipeline_mode<synchronous>, transform_indices = @transform_4, window_bounds = array<i64: 1, 32>}, {transform_indices = @transform_5, window_bounds = array<i64: 2, 32, 256>}]} {
    %c0 = arith.constant 0 : index
    %c0_0 = arith.constant 0 : index
    %c0_1 = arith.constant 0 : index
    %0 = vector.load %arg1[%c0, %c0_0, %c0_1] : memref<2x32x256xf32, #tpu.memory_space<vmem>>, vector<2x32x256xf32>
    %cst = arith.constant dense<0.000000e+00> : vector<2x32xf32>
    %1 = vector.multi_reduction <add>, %0, %cst [2] : vector<2x32x256xf32> to vector<2x32xf32>
    %cst_2 = arith.constant 3.906250e-03 : f32
    %2 = vector.broadcast %cst_2 : f32 to vector<2x32xf32>
    %3 = arith.mulf %1, %2 : vector<2x32xf32>
    %c0_3 = arith.constant 0 : index
    %c0_4 = arith.constant 0 : index
    %4 = vector.load %arg3[%c0_3, %c0_4] : memref<1x2xf32, #tpu.memory_space<vmem>>, vector<1x2xf32>
    %c0_5 = arith.constant 0 : index
    %c0_6 = arith.constant 0 : index
    %5 = vector.load %arg5[%c0_5, %c0_6] : memref<1x32xf32, #tpu.memory_space<vmem>>, vector<1x32xf32>
    %6 = vector.shape_cast %3 : vector<2x32xf32> to vector<2x1x32xf32>
    %c0_7 = arith.constant 0 : index
    %c0_8 = arith.constant 0 : index
    %7 = vector.load %arg2[%c0_7, %c0_8] : memref<2x32xf32, #tpu.memory_space<vmem>>, vector<2x32xf32>
    %8 = vector.shape_cast %7 : vector<2x32xf32> to vector<1x2x32xf32>
    %9 = vector.broadcast %6 : vector<2x1x32xf32> to vector<2x2x32xf32>
    %10 = vector.broadcast %8 : vector<1x2x32xf32> to vector<2x2x32xf32>
    %11 = arith.mulf %9, %10 : vector<2x2x32xf32>
    %cst_9 = arith.constant dense<0.000000e+00> : vector<2x2xf32>
    %12 = vector.multi_reduction <add>, %11, %cst_9 [2] : vector<2x2x32xf32> to vector<2x2xf32>
    %13 = vector.broadcast %4 : vector<1x2xf32> to vector<2x2xf32>
    %14 = arith.addf %12, %13 : vector<2x2xf32>
    %cst_10 = arith.constant 0.000000e+00 : f32
    %15 = vector.broadcast %cst_10 : f32 to vector<2x2xf32>
    %16 = arith.maximumf %14, %15 : vector<2x2xf32>
    %17 = vector.shape_cast %16 : vector<2x2xf32> to vector<2x1x2xf32>
    %c0_11 = arith.constant 0 : index
    %c0_12 = arith.constant 0 : index
    %18 = vector.load %arg4[%c0_11, %c0_12] : memref<32x2xf32, #tpu.memory_space<vmem>>, vector<32x2xf32>
    %19 = vector.shape_cast %18 : vector<32x2xf32> to vector<1x32x2xf32>
    %20 = vector.broadcast %17 : vector<2x1x2xf32> to vector<2x32x2xf32>
    %21 = vector.broadcast %19 : vector<1x32x2xf32> to vector<2x32x2xf32>
    %22 = arith.mulf %20, %21 : vector<2x32x2xf32>
    %cst_13 = arith.constant dense<0.000000e+00> : vector<2x32xf32>
    %23 = vector.multi_reduction <add>, %22, %cst_13 [2] : vector<2x32x2xf32> to vector<2x32xf32>
    %24 = vector.broadcast %5 : vector<1x32xf32> to vector<2x32xf32>
    %25 = arith.addf %23, %24 : vector<2x32xf32>
    %26 = arith.negf %25 : vector<2x32xf32>
    %27 = math.exp %26 : vector<2x32xf32>
    %cst_14 = arith.constant 1.000000e+00 : f32
    %28 = vector.broadcast %cst_14 : f32 to vector<2x32xf32>
    %29 = arith.addf %28, %27 : vector<2x32xf32>
    %30 = arith.divf %28, %29 : vector<2x32xf32>
    %31 = vector.shape_cast %30 : vector<2x32xf32> to vector<2x32x1xf32>
    %32 = vector.broadcast %31 : vector<2x32x1xf32> to vector<2x32x256xf32>
    %33 = arith.mulf %0, %32 : vector<2x32x256xf32>
    %c0_15 = arith.constant 0 : index
    %c0_16 = arith.constant 0 : index
    %c0_17 = arith.constant 0 : index
    %34 = vector.load %arg6[%c0_15, %c0_16, %c0_17] : memref<2x32x256xf32, #tpu.memory_space<vmem>>, vector<2x32x256xf32>
    tpu.vector_store %arg6[%c0_15, %c0_16, %c0_17], %33 {strides = array<i32>} : memref<2x32x256xf32, #tpu.memory_space<vmem>>, vector<2x32x256xf32>,
    return
  }
  func.func @transform_0(%arg0: i32) -> (i32, i32, i32) {
    %c0_i32 = arith.constant 0 : i32
    %c0_i32_0 = arith.constant 0 : i32
    %c0_i32_1 = arith.constant 0 : i32
    return %arg0, %c0_i32, %c0_i32_0 : i32, i32, i32
  }
  func.func @transform_1(%arg0: i32) -> (i32, i32) {
    %c0_i32 = arith.constant 0 : i32
    %c0_i32_0 = arith.constant 0 : i32
    %c0_i32_1 = arith.constant 0 : i32
    return %c0_i32, %c0_i32_0 : i32, i32
  }
  func.func @transform_2(%arg0: i32) -> (i32, i32) {
    %c0_i32 = arith.constant 0 : i32
    %c0_i32_0 = arith.constant 0 : i32
    %c0_i32_1 = arith.constant 0 : i32
    return %c0_i32, %c0_i32_0 : i32, i32
  }
  func.func @transform_3(%arg0: i32) -> (i32, i32) {
    %c0_i32 = arith.constant 0 : i32
    %c0_i32_0 = arith.constant 0 : i32
    %c0_i32_1 = arith.constant 0 : i32
    return %c0_i32, %c0_i32_0 : i32, i32
  }
  func.func @transform_4(%arg0: i32) -> (i32, i32) {
    %c0_i32 = arith.constant 0 : i32
    %c0_i32_0 = arith.constant 0 : i32
    %c0_i32_1 = arith.constant 0 : i32
    return %c0_i32, %c0_i32_0 : i32, i32
  }
  func.func @transform_5(%arg0: i32) -> (i32, i32, i32) {
    %c0_i32 = arith.constant 0 : i32
    %c0_i32_0 = arith.constant 0 : i32
    %c0_i32_1 = arith.constant 0 : i32
    return %arg0, %c0_i32, %c0_i32_0 : i32, i32, i32
  }
}

</mosaic_0001>

<llo_original>
// kernel: tpu_custom_call.1
$region0: #{tpu_custom_call.1}
  #allocation0 [shape = 'u32[]', space=smem, size = 0x4, offset = 0x4, fixed_abs, tag = 'smem constant byte address 0x4 - core index']
  #allocation1 [shape = 'u32[144,128]{1,0:T(1,128)}', space=vmem, size = 0x12000, scoped, tag = 'internal scratch']
  %s0 = inlined_call_operand.hbm [shape: f32[4,32,256], index: 0, kind: input, shape index: {}]
  %s1 = inlined_call_operand.vmem [shape: f32[2,32], index: 1, kind: input, shape index: {}]
  %s2 = inlined_call_operand.vmem [shape: f32[1,2], index: 2, kind: input, shape index: {}]
  %s3 = inlined_call_operand.vmem [shape: f32[32,2], index: 3, kind: input, shape index: {}]
  %s4 = inlined_call_operand.vmem [shape: f32[1,32], index: 4, kind: input, shape index: {}]
  %s5 = inlined_call_operand.hbm [shape: f32[4,32,256], index: 5, kind: output, shape index: {}]
  %s6 = sld [smem:[#allocation0]]
  $region57: #{tpu_custom_call.1} parent=0
    _
  %s8 = ssub.s32 1, %s6
  %s9 = scalar_select 0, %s8, %s6
  $region1: #{tpu_custom_call.1} parent=0
    #allocation2 [shape = 'u8[131072]{0}', space=vmem, size = 0x20000, scoped, tag = 'input window, operand 0']
    #allocation3 [shape = 's32[2]{0}', space=sflag, size = 0x8, scoped, tag = 'scoped memory for tpu_custom_call.1']
    #allocation4 [shape = 's32[2]{0}', space=sflag, size = 0x8, scoped, tag = 'scoped memory for tpu_custom_call.1']
    #allocation5 [shape = 'u8[131072]{0}', space=vmem, size = 0x20000, scoped, tag = 'output window, operand 0']
    %10 = vsyncpa [#allocation3], 0
    %s11 = scalar_lea.sflag [#allocation3], 1
    %12 = vsyncpa %s11, 0
    %13 = vsyncpa [#allocation4], 0
    %s14 = scalar_lea.sflag [#allocation4], 1
    %15 = vsyncpa %s14, 0
    loop: start=0, step=1, limit=4
    $region2: #{tpu_custom_call.1} parent=1 // loop_pre_header
      _
    $region3: #{tpu_custom_call.1} parent=1 // loop_header
      %s17 = sphi 0, %s21
      %p18 = scmp.ge.s32.totalorder %s17, 4
      %s27 = sphi 0, %s29
      %s30 = sphi 0, %s27
      %s31 = sphi 0, %s30
      %s47 = sphi 0, %s31
      %s51 = sphi 0, %s51
      %s53 = sphi 0, %s51
      %s54 = sphi 0, %s53
      %s68 = sphi 0, %s54
      %s72 = sphi 0, %s72
      %s74 = sphi 0, %s72
      %s75 = sphi 0, %s74
      %s89 = sphi 0, %s75
      %s93 = sphi 0, %s93
      %s95 = sphi 0, %s93
      %s96 = sphi 0, %s95
      %s110 = sphi 0, %s96
      %s114 = sphi 0, %s114
      %s116 = sphi 0, %s114
      %s117 = sphi 0, %s116
      %s131 = sphi 0, %s117
      %s137 = sphi 0, %s139
      %s140 = sphi 0, %s137
      %s141 = sphi 0, %s140
      %s157 = sphi 0, %s141
    $region4: #{tpu_custom_call.1} parent=1 // loop_header_branch
      %20 = sbr.rel (%p18) target = $region8
    $region5: #{tpu_custom_call.1} parent=1 // loop_body
      %s22 = ssub.s32 %s17, 1
      %s23 = ssub.s32 %s17, 2
      %s24 = sadd.s32 %s17, 1
      %s25 = ssub.s32 %s17, %s24
      %p26 = scmp.eq.s32.totalorder %s25, 0
      %s28 = sadd.s32 %s27, 1
      %s29 = scalar_select %p26, %s27, %s28
      %p32 = pneg %p26
      %p33 = scmp.eq.s32.totalorder %s17, 1
      %p34 = por %p32, %p33
      %p35 = scmp.ne.s32.totalorder %s27, %s30
      %p36 = scmp.eq.s32.totalorder %s17, 0
      %p37 = por %p35, %p36
      %p38 = scmp.ne.s32.totalorder %s27, %s30
      %p39 = scmp.eq.s32.totalorder %s22, 1
      %p40 = por %p38, %p39
      %p41 = scmp.ne.s32.totalorder %s30, %s31
      %p42 = scmp.eq.s32.totalorder %s22, 0
      %p43 = por %p41, %p42
      %p44 = scmp.ne.s32.totalorder %s30, %s31
      %p45 = scmp.eq.s32.totalorder %s23, 1
      %p46 = por %p44, %p45
      %p48 = scmp.ne.s32.totalorder %s31, %s47
      %p49 = scmp.eq.s32.totalorder %s23, 0
      %p50 = por %p48, %p49
      %s52 = sadd.s32 %s51, 1
      %p55 = scmp.eq.s32.totalorder %s17, 1
      %p56 = scmp.ne.s32.totalorder %s51, %s53
      %p57 = scmp.eq.s32.totalorder %s17, 0
      %p58 = por %p56, %p57
      %p59 = scmp.ne.s32.totalorder %s51, %s53
      %p60 = scmp.eq.s32.totalorder %s22, 1
      %p61 = por %p59, %p60
      %p62 = scmp.ne.s32.totalorder %s53, %s54
      %p63 = scmp.eq.s32.totalorder %s22, 0
      %p64 = por %p62, %p63
      %p65 = scmp.ne.s32.totalorder %s53, %s54
      %p66 = scmp.eq.s32.totalorder %s23, 1
      %p67 = por %p65, %p66
      %p69 = scmp.ne.s32.totalorder %s54, %s68
      %p70 = scmp.eq.s32.totalorder %s23, 0
      %p71 = por %p69, %p70
      %s73 = sadd.s32 %s72, 1
      %p76 = scmp.eq.s32.totalorder %s17, 1
      %p77 = scmp.ne.s32.totalorder %s72, %s74
      %p78 = scmp.eq.s32.totalorder %s17, 0
      %p79 = por %p77, %p78
      %p80 = scmp.ne.s32.totalorder %s72, %s74
      %p81 = scmp.eq.s32.totalorder %s22, 1
      %p82 = por %p80, %p81
      %p83 = scmp.ne.s32.totalorder %s74, %s75
      %p84 = scmp.eq.s32.totalorder %s22, 0
      %p85 = por %p83, %p84
      %p86 = scmp.ne.s32.totalorder %s74, %s75
      %p87 = scmp.eq.s32.totalorder %s23, 1
      %p88 = por %p86, %p87
      %p90 = scmp.ne.s32.totalorder %s75, %s89
      %p91 = scmp.eq.s32.totalorder %s23, 0
      %p92 = por %p90, %p91
      %s94 = sadd.s32 %s93, 1
      %p97 = scmp.eq.s32.totalorder %s17, 1
      %p98 = scmp.ne.s32.totalorder %s93, %s95
      %p99 = scmp.eq.s32.totalorder %s17, 0
      %p100 = por %p98, %p99
      %p101 = scmp.ne.s32.totalorder %s93, %s95
      %p102 = scmp.eq.s32.totalorder %s22, 1
      %p103 = por %p101, %p102
      %p104 = scmp.ne.s32.totalorder %s95, %s96
      %p105 = scmp.eq.s32.totalorder %s22, 0
      %p106 = por %p104, %p105
      %p107 = scmp.ne.s32.totalorder %s95, %s96
      %p108 = scmp.eq.s32.totalorder %s23, 1
      %p109 = por %p107, %p108
      %p111 = scmp.ne.s32.totalorder %s96, %s110
      %p112 = scmp.eq.s32.totalorder %s23, 0
      %p113 = por %p111, %p112
      %s115 = sadd.s32 %s114, 1
      %p118 = scmp.eq.s32.totalorder %s17, 1
      %p119 = scmp.ne.s32.totalorder %s114, %s116
      %p120 = scmp.eq.s32.totalorder %s17, 0
      %p121 = por %p119, %p120
      %p122 = scmp.ne.s32.totalorder %s114, %s116
      %p123 = scmp.eq.s32.totalorder %s22, 1
      %p124 = por %p122, %p123
      %p125 = scmp.ne.s32.totalorder %s116, %s117
      %p126 = scmp.eq.s32.totalorder %s22, 0
      %p127 = por %p125, %p126
      %p128 = scmp.ne.s32.totalorder %s116, %s117
      %p129 = scmp.eq.s32.totalorder %s23, 1
      %p130 = por %p128, %p129
      %p132 = scmp.ne.s32.totalorder %s117, %s131
      %p133 = scmp.eq.s32.totalorder %s23, 0
      %p134 = por %p132, %p133
      %s135 = ssub.s32 %s17, %s24
      %p136 = scmp.eq.s32.totalorder %s135, 0
      %s138 = sadd.s32 %s137, 1
      %s139 = scalar_select %p136, %s137, %s138
      %p142 = pneg %p136
      %p143 = scmp.eq.s32.totalorder %s17, 1
      %p144 = por %p142, %p143
      %p145 = scmp.ne.s32.totalorder %s137, %s140
      %p146 = scmp.eq.s32.totalorder %s17, 0
      %p147 = por %p145, %p146
      %p148 = scmp.ne.s32.totalorder %s137, %s140
      %p149 = scmp.eq.s32.totalorder %s22, 1
      %p150 = por %p148, %p149
      %p151 = scmp.ne.s32.totalorder %s140, %s141
      %p152 = scmp.eq.s32.totalorder %s22, 0
      %p153 = por %p151, %p152
      %p154 = scmp.ne.s32.totalorder %s140, %s141
      %p155 = scmp.eq.s32.totalorder %s23, 1
      %p156 = por %p154, %p155
      %p158 = scmp.ne.s32.totalorder %s141, %s157
      %p159 = scmp.eq.s32.totalorder %s23, 0
      %p160 = por %p158, %p159
      %p161 = scmp.le.s32.totalorder 1, %s17
      %p162 = scmp.lt.s32.totalorder %s17, 3
      %p163 = pnand %p161, %p162
      %p164 = pneg %p163
      // Predicated region
      $region9: #{tpu_custom_call.1} parent=5 // pred_check
        _
      $region10: #{tpu_custom_call.1} parent=5 // pred_check_branch
        %166 = sbr.rel (%p163) target = $region12
      $region11: #{tpu_custom_call.1} parent=5 // pred_region
        %s167 = ssub.s32 %s17, 1
        // Predicated region
        $region13: #{tpu_custom_call.1} parent=11 // pred_check
          %p168 = pneg %p64
        $region14: #{tpu_custom_call.1} parent=11 // pred_check_branch
          %170 = sbr.rel (%p168) target = $region16
        $region15: #{tpu_custom_call.1} parent=11 // pred_region
          _
        $region16: #{tpu_custom_call.1} parent=11 // pred_fallthru
          _
        // Predicated region
        $region17: #{tpu_custom_call.1} parent=11 // pred_check
          %p171 = pneg %p85
        $region18: #{tpu_custom_call.1} parent=11 // pred_check_branch
          %173 = sbr.rel (%p171) target = $region20
        $region19: #{tpu_custom_call.1} parent=11 // pred_region
          _
        $region20: #{tpu_custom_call.1} parent=11 // pred_fallthru
          _
        // Predicated region
        $region21: #{tpu_custom_call.1} parent=11 // pred_check
          %p174 = pneg %p106
        $region22: #{tpu_custom_call.1} parent=11 // pred_check_branch
          %176 = sbr.rel (%p174) target = $region24
        $region23: #{tpu_custom_call.1} parent=11 // pred_region
          _
        $region24: #{tpu_custom_call.1} parent=11 // pred_fallthru
          _
        // Predicated region
        $region25: #{tpu_custom_call.1} parent=11 // pred_check
          %p177 = pneg %p127
        $region26: #{tpu_custom_call.1} parent=11 // pred_check_branch
          %179 = sbr.rel (%p177) target = $region28
        $region27: #{tpu_custom_call.1} parent=11 // pred_region
          _
        $region28: #{tpu_custom_call.1} parent=11 // pred_fallthru
          _
      $region12: #{tpu_custom_call.1} parent=5 // pred_fallthru
        _
      %p180 = scmp.lt.s32.totalorder %s17, 2
      // Predicated region
      $region29: #{tpu_custom_call.1} parent=5 // pred_check
        %p181 = pneg %p180
      $region30: #{tpu_custom_call.1} parent=5 // pred_check_branch
        %183 = sbr.rel (%p181) target = $region32
      $region31: #{tpu_custom_call.1} parent=5 // pred_region
        // Predicated region
        $region33: #{tpu_custom_call.1} parent=31 // pred_check
          %p184 = pneg %p37
        $region34: #{tpu_custom_call.1} parent=31 // pred_check_branch
          %186 = sbr.rel (%p184) target = $region36
        $region35: #{tpu_custom_call.1} parent=31 // pred_region
          %s187 = sand.u32 %s27, 1
          %s188 = scalar_lea.sflag [#allocation3], %s187
          %s189 = sand.u32 %s27, 1
          %s190 = smul.addr %s189, 128
          %s191 = scalar_lea.vmem [#allocation2], %s190
          %s192 = smul.u32 2, %s17
          %s194 = ssub.s32 2048, 2048
          %195 = vsyncadd %s188, %s194
          %s196 = smul.addr %s192, 8
          %s197 = smul.addr %s196, 128
          %s198 = scalar_lea.hbm %s0, %s197
          %s199 = sshll.u32 %s191, 4
          %s200 = int_to_ptr.vmem [resolvable:$true] %s199
          %205 = dma.hbm_to_vmem [thread:$0]  %s198, 2048, %s200, %s188, 256, 256, 16
        $region36: #{tpu_custom_call.1} parent=31 // pred_fallthru
          _
      $region32: #{tpu_custom_call.1} parent=5 // pred_fallthru
        _
      %p206 = scmp.le.s32.totalorder 1, %s17
      %p207 = scmp.lt.s32.totalorder %s17, 3
      %p208 = pnand %p206, %p207
      %p209 = pneg %p208
      // Predicated region
      $region37: #{tpu_custom_call.1} parent=5 // pred_check
        _
      $region38: #{tpu_custom_call.1} parent=5 // pred_check_branch
        %211 = sbr.rel (%p208) target = $region40
      $region39: #{tpu_custom_call.1} parent=5 // pred_region
        %s212 = ssub.s32 %s17, 1
        %s213 = sand.u32 %s30, 1
        %s214 = scalar_lea.sflag [#allocation3], %s213
        %s215 = sand.u32 %s30, 1
        %s216 = smul.addr %s215, 128
        %s217 = scalar_lea.vmem [#allocation2], %s216
        // Predicated region
        $region41: #{tpu_custom_call.1} parent=39 // pred_check
          %p218 = pneg %p43
        $region42: #{tpu_custom_call.1} parent=39 // pred_check_branch
          %220 = sbr.rel (%p218) target = $region44
        $region43: #{tpu_custom_call.1} parent=39 // pred_region
          %221 = dma.done %s214, 2048
        $region44: #{tpu_custom_call.1} parent=39 // pred_fallthru
          _
        %s222 = sand.u32 %s30, 1
        %s223 = scalar_lea.sflag [#allocation3], %s222
        %s224 = sand.u32 %s30, 1
        %s225 = smul.addr %s224, 128
        %s226 = scalar_lea.vmem [#allocation2], %s225
        %p227 = pneg %p43
        %p228 = pneg %p40
        %p229 = pneg %p64
        %p230 = pneg %p61
        %p231 = pneg %p85
        %p232 = pneg %p82
        %p233 = pneg %p106
        %p234 = pneg %p103
        %p235 = pneg %p127
        %p236 = pneg %p124
        %p237 = pneg %p153
        %p238 = pneg %p150
        %s239 = sand.u32 %s140, 1
        %s240 = scalar_lea.sflag [#allocation4], %s239
        %s241 = sand.u32 %s140, 1
        %s242 = smul.addr %s241, 128
        %s243 = scalar_lea.vmem [#allocation5], %s242
        %s244 = smul.u32 2, %s22
        %s245 = smul.u32 2, %s22
        %v246 = vld [vmem:[%s217] sm:$0xff]
        %v247 = vld [vmem:[%s217 + $0x8] sm:$0xff]
        %v248 = vld [vmem:[%s217 + $0x10] sm:$0xff]
        %v249 = vld [vmem:[%s217 + $0x18] sm:$0xff]
        %v250 = vld [vmem:[%s217 + $0x20] sm:$0xff]
        %v251 = vld [vmem:[%s217 + $0x28] sm:$0xff]
        %v252 = vld [vmem:[%s217 + $0x30] sm:$0xff]
        %v253 = vld [vmem:[%s217 + $0x38] sm:$0xff]
        %v254 = vld [vmem:[%s217 + $0x40] sm:$0xff]
        %v255 = vld [vmem:[%s217 + $0x48] sm:$0xff]
        %v256 = vld [vmem:[%s217 + $0x50] sm:$0xff]
        %v257 = vld [vmem:[%s217 + $0x58] sm:$0xff]
        %v258 = vld [vmem:[%s217 + $0x60] sm:$0xff]
        %v259 = vld [vmem:[%s217 + $0x68] sm:$0xff]
        %v260 = vld [vmem:[%s217 + $0x70] sm:$0xff]
        %v261 = vld [vmem:[%s217 + $0x78] sm:$0xff]
        %v262 = vadd.f32 %v246, %v247
        %263 = vadd.xlane.f32.xlu0 %v262
        %v264 = vpop.xlane.xlu0 %263
        %v265 = vadd.f32 %v248, %v249
        %266 = vadd.xlane.f32.xlu0 %v265
        %v267 = vpop.xlane.xlu0 %266
        %v268 = vadd.f32 %v250, %v251
        %269 = vadd.xlane.f32.xlu0 %v268
        %v270 = vpop.xlane.xlu0 %269
        %v271 = vadd.f32 %v252, %v253
        %272 = vadd.xlane.f32.xlu0 %v271
        %v273 = vpop.xlane.xlu0 %272
        %v274 = vadd.f32 %v254, %v255
        %275 = vadd.xlane.f32.xlu0 %v274
        %v276 = vpop.xlane.xlu0 %275
        %v277 = vadd.f32 %v256, %v257
        %278 = vadd.xlane.f32.xlu0 %v277
        %v279 = vpop.xlane.xlu0 %278
        %v280 = vadd.f32 %v258, %v259
        %281 = vadd.xlane.f32.xlu0 %v280
        %v282 = vpop.xlane.xlu0 %281
        %v283 = vadd.f32 %v260, %v261
        %284 = vadd.xlane.f32.xlu0 %v283
        %v285 = vpop.xlane.xlu0 %284
        %v286 = vmul.f32 %v264, 0.00390625
        %v287 = vmul.f32 %v267, 0.00390625
        %v288 = vmul.f32 %v270, 0.00390625
        %v289 = vmul.f32 %v273, 0.00390625
        %v290 = vmul.f32 %v276, 0.00390625
        %v291 = vmul.f32 %v279, 0.00390625
        %v292 = vmul.f32 %v282, 0.00390625
        %v293 = vmul.f32 %v285, 0.00390625
        %v294 = vld [vmem:[%s2] sm:$0x1]
        %v295 = vld [vmem:[%s4] sm:$0x1]
        %v296 = vld [vmem:[%s1] sm:$0x3]
        %v298 = vlaneseq
        %v299 = vshrl.u32 %v298, 7
        %v300 = vsub.s32 0, %v299
        %v301 = vrot.slane %v296, %v300
        %303 = vbcast.lane.b32.xlu0 %v301, 256
        %v304 = vpop.permute.xlu0 %303
        %s306 = sor.u32 256, 8
        %307 = vbcast.lane.b32.xlu0 %v301, %s306
        %v308 = vpop.permute.xlu0 %307
        %s310 = sor.u32 256, 16
        %311 = vbcast.lane.b32.xlu0 %v301, %s310
        %v312 = vpop.permute.xlu0 %311
        %s314 = sor.u32 256, 24
        %315 = vbcast.lane.b32.xlu0 %v301, %s314
        %v316 = vpop.permute.xlu0 %315
        %v317 = vlaneseq
        %v318 = vshrl.u32 %v317, 7
        %v319 = vsub.s32 1, %v318
        %v320 = vrot.slane %v296, %v319
        %322 = vbcast.lane.b32.xlu0 %v320, 256
        %v323 = vpop.permute.xlu0 %322
        %s325 = sor.u32 256, 8
        %326 = vbcast.lane.b32.xlu0 %v320, %s325
        %v327 = vpop.permute.xlu0 %326
        %s329 = sor.u32 256, 16
        %330 = vbcast.lane.b32.xlu0 %v320, %s329
        %v331 = vpop.permute.xlu0 %330
        %s333 = sor.u32 256, 24
        %334 = vbcast.lane.b32.xlu0 %v320, %s333
        %v335 = vpop.permute.xlu0 %334
        %v344 = vmul.f32 %v286, %v304
        %v345 = vmul.f32 %v287, %v308
        %v346 = vmul.f32 %v288, %v312
        %v347 = vmul.f32 %v289, %v316
        %v348 = vmul.f32 %v286, %v323
        %v349 = vmul.f32 %v287, %v327
        %v350 = vmul.f32 %v288, %v331
        %v351 = vmul.f32 %v289, %v335
        %v352 = vmul.f32 %v290, %v304
        %v353 = vmul.f32 %v291, %v308
        %v354 = vmul.f32 %v292, %v312
        %v355 = vmul.f32 %v293, %v316
        %v356 = vmul.f32 %v290, %v323
        %v357 = vmul.f32 %v291, %v327
        %v358 = vmul.f32 %v292, %v331
        %v359 = vmul.f32 %v293, %v335
        %376 = vset.pattern.permute.xlu0 0
        %377 = vperm.xlu0 %376, %v344
        %v378 = vpop.permute.xlu0 %377
        %379 = vset.pattern.permute.xlu0 0
        %380 = vperm.xlu0 %379, %v345
        %v381 = vpop.permute.xlu0 %380
        %382 = vset.pattern.permute.xlu0 0
        %383 = vperm.xlu0 %382, %v346
        %v384 = vpop.permute.xlu0 %383
        %385 = vset.pattern.permute.xlu0 0
        %386 = vperm.xlu0 %385, %v347
        %v387 = vpop.permute.xlu0 %386
        %388 = vset.pattern.permute.xlu0 0
        %389 = vperm.xlu0 %388, %v348
        %v390 = vpop.permute.xlu0 %389
        %391 = vset.pattern.permute.xlu0 0
        %392 = vperm.xlu0 %391, %v349
        %v393 = vpop.permute.xlu0 %392
        %394 = vset.pattern.permute.xlu0 0
        %395 = vperm.xlu0 %394, %v350
        %v396 = vpop.permute.xlu0 %395
        %397 = vset.pattern.permute.xlu0 0
        %398 = vperm.xlu0 %397, %v351
        %v399 = vpop.permute.xlu0 %398
        %400 = vset.pattern.permute.xlu0 0
        %401 = vperm.xlu0 %400, %v352
        %v402 = vpop.permute.xlu0 %401
        %403 = vset.pattern.permute.xlu0 0
        %404 = vperm.xlu0 %403, %v353
        %v405 = vpop.permute.xlu0 %404
        %406 = vset.pattern.permute.xlu0 0
        %407 = vperm.xlu0 %406, %v354
        %v408 = vpop.permute.xlu0 %407
        %409 = vset.pattern.permute.xlu0 0
        %410 = vperm.xlu0 %409, %v355
        %v411 = vpop.permute.xlu0 %410
        %412 = vset.pattern.permute.xlu0 0
        %413 = vperm.xlu0 %412, %v356
        %v414 = vpop.permute.xlu0 %413
        %415 = vset.pattern.permute.xlu0 0
        %416 = vperm.xlu0 %415, %v357
        %v417 = vpop.permute.xlu0 %416
        %418 = vset.pattern.permute.xlu0 0
        %419 = vperm.xlu0 %418, %v358
        %v420 = vpop.permute.xlu0 %419
        %421 = vset.pattern.permute.xlu0 0
        %422 = vperm.xlu0 %421, %v359
        %v423 = vpop.permute.xlu0 %422
        %v424 = vlaneseq
        %v425 = vand.u32 %v424, 127
        %v426 = vlaneseq
        %v427 = vshrl.u32 %v426, 7
        %v428 = vsub.s32 %v425, %v427
        %v429 = vrot.slane %v378, %v428
        %v430 = vadd.s32 %v425, 4294967288
        %v431 = vlaneseq
        %v432 = vshrl.u32 %v431, 7
        %v433 = vsub.s32 %v430, %v432
        %v434 = vrot.slane %v381, %v433
        %vm435 = vcmask 130112
        %v436 = vsel %vm435, %v434, %v429
        %v437 = vadd.s32 %v425, 4294967280
        %v438 = vlaneseq
        %v439 = vshrl.u32 %v438, 7
        %v440 = vsub.s32 %v437, %v439
        %v441 = vrot.slane %v384, %v440
        %vm442 = vcmask 195712
        %v443 = vsel %vm442, %v441, %v436
        %v444 = vadd.s32 %v425, 4294967272
        %v445 = vlaneseq
        %v446 = vshrl.u32 %v445, 7
        %v447 = vsub.s32 %v444, %v446
        %v448 = vrot.slane %v387, %v447
        %vm449 = vcmask 261312
        %v450 = vsel %vm449, %v448, %v443
        %v451 = vlaneseq
        %v452 = vshrl.u32 %v451, 7
        %v453 = vsub.s32 %v425, %v452
        %v454 = vrot.slane %v390, %v453
        %v455 = vlaneseq
        %v456 = vshrl.u32 %v455, 7
        %v457 = vsub.s32 %v430, %v456
        %v458 = vrot.slane %v393, %v457
        %v459 = vsel %vm435, %v458, %v454
        %v460 = vlaneseq
        %v461 = vshrl.u32 %v460, 7
        %v462 = vsub.s32 %v437, %v461
        %v463 = vrot.slane %v396, %v462
        %v464 = vsel %vm442, %v463, %v459
        %v465 = vlaneseq
        %v466 = vshrl.u32 %v465, 7
        %v467 = vsub.s32 %v444, %v466
        %v468 = vrot.slane %v399, %v467
        %v469 = vsel %vm449, %v468, %v464
        %v470 = vlaneseq
        %v471 = vshrl.u32 %v470, 7
        %v472 = vsub.s32 %v425, %v471
        %v473 = vrot.slane %v402, %v472
        %v474 = vlaneseq
        %v475 = vshrl.u32 %v474, 7
        %v476 = vsub.s32 %v430, %v475
        %v477 = vrot.slane %v405, %v476
        %v478 = vsel %vm435, %v477, %v473
        %v479 = vlaneseq
        %v480 = vshrl.u32 %v479, 7
        %v481 = vsub.s32 %v437, %v480
        %v482 = vrot.slane %v408, %v481
        %v483 = vsel %vm442, %v482, %v478
        %v484 = vlaneseq
        %v485 = vshrl.u32 %v484, 7
        %v486 = vsub.s32 %v444, %v485
        %v487 = vrot.slane %v411, %v486
        %v488 = vsel %vm449, %v487, %v483
        %v489 = vlaneseq
        %v490 = vshrl.u32 %v489, 7
        %v491 = vsub.s32 %v425, %v490
        %v492 = vrot.slane %v414, %v491
        %v493 = vlaneseq
        %v494 = vshrl.u32 %v493, 7
        %v495 = vsub.s32 %v430, %v494
        %v496 = vrot.slane %v417, %v495
        %v497 = vsel %vm435, %v496, %v492
        %v498 = vlaneseq
        %v499 = vshrl.u32 %v498, 7
        %v500 = vsub.s32 %v437, %v499
        %v501 = vrot.slane %v420, %v500
        %v502 = vsel %vm442, %v501, %v497
        %v503 = vlaneseq
        %v504 = vshrl.u32 %v503, 7
        %v505 = vsub.s32 %v444, %v504
        %v506 = vrot.slane %v423, %v505
        %v507 = vsel %vm449, %v506, %v502
        %vm508 = vcmask 1041409
        %v509 = vsel %vm508, %v469, %v450
        %v510 = vsel %vm508, %v507, %v488
        %vm513 = vcmask 254976
        %v514 = vsel %vm513, %v509, 0.0
        %515 = vadd.xlane.f32.xlu0 %v514
        %v516 = vpop.xlane.xlu0 %515
        %v517 = vsel %vm513, %v510, 0.0
        %518 = vadd.xlane.f32.xlu0 %v517
        %v519 = vpop.xlane.xlu0 %518
        %v521 = vlaneseq
        %v522 = vshrl.u32 %v521, 7
        %v523 = vsub.s32 0, %v522
        %v524 = vrot.slane %v294, %v523
        %526 = vbcast.lane.b32.xlu0 %v524, 256
        %v527 = vpop.permute.xlu0 %526
        %v529 = vadd.f32 %v516, %v527
        %v530 = vadd.f32 %v519, %v527
        %v531 = vmax.f32 %v529, 0.0
        %v532 = vmax.f32 %v530, 0.0
        %v533 = vld [vmem:[%s3] sm:$0xff]
        %v534 = vld [vmem:[%s3 + $0x8] sm:$0xff]
        %v535 = vld [vmem:[%s3 + $0x10] sm:$0xff]
        %v536 = vld [vmem:[%s3 + $0x18] sm:$0xff]
        %v541 = vlaneseq
        %v542 = vshrl.u32 %v541, 7
        %v543 = vsub.s32 0, %v542
        %v544 = vrot.slane %v533, %v543
        %546 = vbcast.lane.b32.xlu0 %v544, 256
        %v547 = vpop.permute.xlu0 %546
        %v548 = vlaneseq
        %v549 = vshrl.u32 %v548, 7
        %v550 = vsub.s32 1, %v549
        %v551 = vrot.slane %v533, %v550
        %553 = vbcast.lane.b32.xlu0 %v551, 256
        %v554 = vpop.permute.xlu0 %553
        %v555 = vlaneseq
        %v556 = vshrl.u32 %v555, 7
        %v557 = vsub.s32 2, %v556
        %v558 = vrot.slane %v533, %v557
        %560 = vbcast.lane.b32.xlu0 %v558, 256
        %v561 = vpop.permute.xlu0 %560
        %v562 = vlaneseq
        %v563 = vshrl.u32 %v562, 7
        %v564 = vsub.s32 3, %v563
        %v565 = vrot.slane %v533, %v564
        %567 = vbcast.lane.b32.xlu0 %v565, 256
        %v568 = vpop.permute.xlu0 %567
        %v569 = vlaneseq
        %v570 = vshrl.u32 %v569, 7
        %v571 = vsub.s32 4, %v570
        %v572 = vrot.slane %v533, %v571
        %574 = vbcast.lane.b32.xlu0 %v572, 256
        %v575 = vpop.permute.xlu0 %574
        %v576 = vlaneseq
        %v577 = vshrl.u32 %v576, 7
        %v578 = vsub.s32 5, %v577
        %v579 = vrot.slane %v533, %v578
        %581 = vbcast.lane.b32.xlu0 %v579, 256
        %v582 = vpop.permute.xlu0 %581
        %v583 = vlaneseq
        %v584 = vshrl.u32 %v583, 7
        %v585 = vsub.s32 6, %v584
        %v586 = vrot.slane %v533, %v585
        %588 = vbcast.lane.b32.xlu0 %v586, 256
        %v589 = vpop.permute.xlu0 %588
        %v590 = vlaneseq
        %v591 = vshrl.u32 %v590, 7
        %v592 = vsub.s32 7, %v591
        %v593 = vrot.slane %v533, %v592
        %595 = vbcast.lane.b32.xlu0 %v593, 256
        %v596 = vpop.permute.xlu0 %595
        %v597 = vlaneseq
        %v598 = vshrl.u32 %v597, 7
        %v599 = vsub.s32 0, %v598
        %v600 = vrot.slane %v534, %v599
        %602 = vbcast.lane.b32.xlu0 %v600, 256
        %v603 = vpop.permute.xlu0 %602
        %v604 = vlaneseq
        %v605 = vshrl.u32 %v604, 7
        %v606 = vsub.s32 1, %v605
        %v607 = vrot.slane %v534, %v606
        %609 = vbcast.lane.b32.xlu0 %v607, 256
        %v610 = vpop.permute.xlu0 %609
        %v611 = vlaneseq
        %v612 = vshrl.u32 %v611, 7
        %v613 = vsub.s32 2, %v612
        %v614 = vrot.slane %v534, %v613
        %616 = vbcast.lane.b32.xlu0 %v614, 256
        %v617 = vpop.permute.xlu0 %616
        %v618 = vlaneseq
        %v619 = vshrl.u32 %v618, 7
        %v620 = vsub.s32 3, %v619
        %v621 = vrot.slane %v534, %v620
        %623 = vbcast.lane.b32.xlu0 %v621, 256
        %v624 = vpop.permute.xlu0 %623
        %v625 = vlaneseq
        %v626 = vshrl.u32 %v625, 7
        %v627 = vsub.s32 4, %v626
        %v628 = vrot.slane %v534, %v627
        %630 = vbcast.lane.b32.xlu0 %v628, 256
        %v631 = vpop.permute.xlu0 %630
        %v632 = vlaneseq
        %v633 = vshrl.u32 %v632, 7
        %v634 = vsub.s32 5, %v633
        %v635 = vrot.slane %v534, %v634
        %637 = vbcast.lane.b32.xlu0 %v635, 256
        %v638 = vpop.permute.xlu0 %637
        %v639 = vlaneseq
        %v640 = vshrl.u32 %v639, 7
        %v641 = vsub.s32 6, %v640
        %v642 = vrot.slane %v534, %v641
        %644 = vbcast.lane.b32.xlu0 %v642, 256
        %v645 = vpop.permute.xlu0 %644
        %v646 = vlaneseq
        %v647 = vshrl.u32 %v646, 7
        %v648 = vsub.s32 7, %v647
        %v649 = vrot.slane %v534, %v648
        %651 = vbcast.lane.b32.xlu0 %v649, 256
        %v652 = vpop.permute.xlu0 %651
        %v653 = vlaneseq
        %v654 = vshrl.u32 %v653, 7
        %v655 = vsub.s32 0, %v654
        %v656 = vrot.slane %v535, %v655
        %658 = vbcast.lane.b32.xlu0 %v656, 256
        %v659 = vpop.permute.xlu0 %658
        %v660 = vlaneseq
        %v661 = vshrl.u32 %v660, 7
        %v662 = vsub.s32 1, %v661
        %v663 = vrot.slane %v535, %v662
        %665 = vbcast.lane.b32.xlu0 %v663, 256
        %v666 = vpop.permute.xlu0 %665
        %v667 = vlaneseq
        %v668 = vshrl.u32 %v667, 7
        %v669 = vsub.s32 2, %v668
        %v670 = vrot.slane %v535, %v669
        %672 = vbcast.lane.b32.xlu0 %v670, 256
        %v673 = vpop.permute.xlu0 %672
        %v674 = vlaneseq
        %v675 = vshrl.u32 %v674, 7
        %v676 = vsub.s32 3, %v675
        %v677 = vrot.slane %v535, %v676
        %679 = vbcast.lane.b32.xlu0 %v677, 256
        %v680 = vpop.permute.xlu0 %679
        %v681 = vlaneseq
        %v682 = vshrl.u32 %v681, 7
        %v683 = vsub.s32 4, %v682
        %v684 = vrot.slane %v535, %v683
        %686 = vbcast.lane.b32.xlu0 %v684, 256
        %v687 = vpop.permute.xlu0 %686
        %v688 = vlaneseq
        %v689 = vshrl.u32 %v688, 7
        %v690 = vsub.s32 5, %v689
        %v691 = vrot.slane %v535, %v690
        %693 = vbcast.lane.b32.xlu0 %v691, 256
        %v694 = vpop.permute.xlu0 %693
        %v695 = vlaneseq
        %v696 = vshrl.u32 %v695, 7
        %v697 = vsub.s32 6, %v696
        %v698 = vrot.slane %v535, %v697
        %700 = vbcast.lane.b32.xlu0 %v698, 256
        %v701 = vpop.permute.xlu0 %700
        %v702 = vlaneseq
        %v703 = vshrl.u32 %v702, 7
        %v704 = vsub.s32 7, %v703
        %v705 = vrot.slane %v535, %v704
        %707 = vbcast.lane.b32.xlu0 %v705, 256
        %v708 = vpop.permute.xlu0 %707
        %v709 = vlaneseq
        %v710 = vshrl.u32 %v709, 7
        %v711 = vsub.s32 0, %v710
        %v712 = vrot.slane %v536, %v711
        %714 = vbcast.lane.b32.xlu0 %v712, 256
        %v715 = vpop.permute.xlu0 %714
        %v716 = vlaneseq
        %v717 = vshrl.u32 %v716, 7
        %v718 = vsub.s32 1, %v717
        %v719 = vrot.slane %v536, %v718
        %721 = vbcast.lane.b32.xlu0 %v719, 256
        %v722 = vpop.permute.xlu0 %721
        %v723 = vlaneseq
        %v724 = vshrl.u32 %v723, 7
        %v725 = vsub.s32 2, %v724
        %v726 = vrot.slane %v536, %v725
        %728 = vbcast.lane.b32.xlu0 %v726, 256
        %v729 = vpop.permute.xlu0 %728
        %v730 = vlaneseq
        %v731 = vshrl.u32 %v730, 7
        %v732 = vsub.s32 3, %v731
        %v733 = vrot.slane %v536, %v732
        %735 = vbcast.lane.b32.xlu0 %v733, 256
        %v736 = vpop.permute.xlu0 %735
        %v737 = vlaneseq
        %v738 = vshrl.u32 %v737, 7
        %v739 = vsub.s32 4, %v738
        %v740 = vrot.slane %v536, %v739
        %742 = vbcast.lane.b32.xlu0 %v740, 256
        %v743 = vpop.permute.xlu0 %742
        %v744 = vlaneseq
        %v745 = vshrl.u32 %v744, 7
        %v746 = vsub.s32 5, %v745
        %v747 = vrot.slane %v536, %v746
        %749 = vbcast.lane.b32.xlu0 %v747, 256
        %v750 = vpop.permute.xlu0 %749
        %v751 = vlaneseq
        %v752 = vshrl.u32 %v751, 7
        %v753 = vsub.s32 6, %v752
        %v754 = vrot.slane %v536, %v753
        %756 = vbcast.lane.b32.xlu0 %v754, 256
        %v757 = vpop.permute.xlu0 %756
        %v758 = vlaneseq
        %v759 = vshrl.u32 %v758, 7
        %v760 = vsub.s32 7, %v759
        %v761 = vrot.slane %v536, %v760
        %763 = vbcast.lane.b32.xlu0 %v761, 256
        %v764 = vpop.permute.xlu0 %763
        %v797 = vmul.f32 %v531, %v547
        %v798 = vmul.f32 %v531, %v554
        %v799 = vmul.f32 %v531, %v561
        %v800 = vmul.f32 %v531, %v568
        %v801 = vmul.f32 %v531, %v575
        %v802 = vmul.f32 %v531, %v582
        %v803 = vmul.f32 %v531, %v589
        %v804 = vmul.f32 %v531, %v596
        %v805 = vmul.f32 %v531, %v603
        %v806 = vmul.f32 %v531, %v610
        %v807 = vmul.f32 %v531, %v617
        %v808 = vmul.f32 %v531, %v624
        %v809 = vmul.f32 %v531, %v631
        %v810 = vmul.f32 %v531, %v638
        %v811 = vmul.f32 %v531, %v645
        %v812 = vmul.f32 %v531, %v652
        %v813 = vmul.f32 %v531, %v659
        %v814 = vmul.f32 %v531, %v666
        %v815 = vmul.f32 %v531, %v673
        %v816 = vmul.f32 %v531, %v680
        %v817 = vmul.f32 %v531, %v687
        %v818 = vmul.f32 %v531, %v694
        %v819 = vmul.f32 %v531, %v701
        %v820 = vmul.f32 %v531, %v708
        %v821 = vmul.f32 %v531, %v715
        %v822 = vmul.f32 %v531, %v722
        %v823 = vmul.f32 %v531, %v729
        %v824 = vmul.f32 %v531, %v736
        %v825 = vmul.f32 %v531, %v743
        %v826 = vmul.f32 %v531, %v750
        %v827 = vmul.f32 %v531, %v757
        %v828 = vmul.f32 %v531, %v764
        %v829 = vmul.f32 %v532, %v547
        %v830 = vmul.f32 %v532, %v554
        %v831 = vmul.f32 %v532, %v561
        %v832 = vmul.f32 %v532, %v568
        %v833 = vmul.f32 %v532, %v575
        %v834 = vmul.f32 %v532, %v582
        %v835 = vmul.f32 %v532, %v589
        %v836 = vmul.f32 %v532, %v596
        %v837 = vmul.f32 %v532, %v603
        %v838 = vmul.f32 %v532, %v610
        %v839 = vmul.f32 %v532, %v617
        %v840 = vmul.f32 %v532, %v624
        %v841 = vmul.f32 %v532, %v631
        %v842 = vmul.f32 %v532, %v638
        %v843 = vmul.f32 %v532, %v645
        %v844 = vmul.f32 %v532, %v652
        %v845 = vmul.f32 %v532, %v659
        %v846 = vmul.f32 %v532, %v666
        %v847 = vmul.f32 %v532, %v673
        %v848 = vmul.f32 %v532, %v680
        %v849 = vmul.f32 %v532, %v687
        %v850 = vmul.f32 %v532, %v694
        %v851 = vmul.f32 %v532, %v701
        %v852 = vmul.f32 %v532, %v708
        %v853 = vmul.f32 %v532, %v715
        %v854 = vmul.f32 %v532, %v722
        %v855 = vmul.f32 %v532, %v729
        %v856 = vmul.f32 %v532, %v736
        %v857 = vmul.f32 %v532, %v743
        %v858 = vmul.f32 %v532, %v750
        %v859 = vmul.f32 %v532, %v757
        %v860 = vmul.f32 %v532, %v764
        %925 = vset.pattern.permute.xlu0 0
        %926 = vperm.xlu0 %925, %v797
        %v927 = vpop.permute.xlu0 %926
        %928 = vset.pattern.permute.xlu0 0
        %929 = vperm.xlu0 %928, %v798
        %v930 = vpop.permute.xlu0 %929
        %931 = vset.pattern.permute.xlu0 0
        %932 = vperm.xlu0 %931, %v799
        %v933 = vpop.permute.xlu0 %932
        %934 = vset.pattern.permute.xlu0 0
        %935 = vperm.xlu0 %934, %v800
        %v936 = vpop.permute.xlu0 %935
        %937 = vset.pattern.permute.xlu0 0
        %938 = vperm.xlu0 %937, %v801
        %v939 = vpop.permute.xlu0 %938
        %940 = vset.pattern.permute.xlu0 0
        %941 = vperm.xlu0 %940, %v802
        %v942 = vpop.permute.xlu0 %941
        %943 = vset.pattern.permute.xlu0 0
        %944 = vperm.xlu0 %943, %v803
        %v945 = vpop.permute.xlu0 %944
        %946 = vset.pattern.permute.xlu0 0
        %947 = vperm.xlu0 %946, %v804
        %v948 = vpop.permute.xlu0 %947
        %949 = vset.pattern.permute.xlu0 0
        %950 = vperm.xlu0 %949, %v805
        %v951 = vpop.permute.xlu0 %950
        %952 = vset.pattern.permute.xlu0 0
        %953 = vperm.xlu0 %952, %v806
        %v954 = vpop.permute.xlu0 %953
        %955 = vset.pattern.permute.xlu0 0
        %956 = vperm.xlu0 %955, %v807
        %v957 = vpop.permute.xlu0 %956
        %958 = vset.pattern.permute.xlu0 0
        %959 = vperm.xlu0 %958, %v808
        %v960 = vpop.permute.xlu0 %959
        %961 = vset.pattern.permute.xlu0 0
        %962 = vperm.xlu0 %961, %v809
        %v963 = vpop.permute.xlu0 %962
        %964 = vset.pattern.permute.xlu0 0
        %965 = vperm.xlu0 %964, %v810
        %v966 = vpop.permute.xlu0 %965
        %967 = vset.pattern.permute.xlu0 0
        %968 = vperm.xlu0 %967, %v811
        %v969 = vpop.permute.xlu0 %968
        %970 = vset.pattern.permute.xlu0 0
        %971 = vperm.xlu0 %970, %v812
        %v972 = vpop.permute.xlu0 %971
        %973 = vset.pattern.permute.xlu0 0
        %974 = vperm.xlu0 %973, %v813
        %v975 = vpop.permute.xlu0 %974
        %976 = vset.pattern.permute.xlu0 0
        %977 = vperm.xlu0 %976, %v814
        %v978 = vpop.permute.xlu0 %977
        %979 = vset.pattern.permute.xlu0 0
        %980 = vperm.xlu0 %979, %v815
        %v981 = vpop.permute.xlu0 %980
        %982 = vset.pattern.permute.xlu0 0
        %983 = vperm.xlu0 %982, %v816
        %v984 = vpop.permute.xlu0 %983
        %985 = vset.pattern.permute.xlu0 0
        %986 = vperm.xlu0 %985, %v817
        %v987 = vpop.permute.xlu0 %986
        %988 = vset.pattern.permute.xlu0 0
        %989 = vperm.xlu0 %988, %v818
        %v990 = vpop.permute.xlu0 %989
        %991 = vset.pattern.permute.xlu0 0
        %992 = vperm.xlu0 %991, %v819
        %v993 = vpop.permute.xlu0 %992
        %994 = vset.pattern.permute.xlu0 0
        %995 = vperm.xlu0 %994, %v820
        %v996 = vpop.permute.xlu0 %995
        %997 = vset.pattern.permute.xlu0 0
        %998 = vperm.xlu0 %997, %v821
        %v999 = vpop.permute.xlu0 %998
        %1000 = vset.pattern.permute.xlu0 0
        %1001 = vperm.xlu0 %1000, %v822
        %v1002 = vpop.permute.xlu0 %1001
        %1003 = vset.pattern.permute.xlu0 0
        %1004 = vperm.xlu0 %1003, %v823
        %v1005 = vpop.permute.xlu0 %1004
        %1006 = vset.pattern.permute.xlu0 0
        %1007 = vperm.xlu0 %1006, %v824
        %v1008 = vpop.permute.xlu0 %1007
        %1009 = vset.pattern.permute.xlu0 0
        %1010 = vperm.xlu0 %1009, %v825
        %v1011 = vpop.permute.xlu0 %1010
        %1012 = vset.pattern.permute.xlu0 0
        %1013 = vperm.xlu0 %1012, %v826
        %v1014 = vpop.permute.xlu0 %1013
        %1015 = vset.pattern.permute.xlu0 0
        %1016 = vperm.xlu0 %1015, %v827
        %v1017 = vpop.permute.xlu0 %1016
        %1018 = vset.pattern.permute.xlu0 0
        %1019 = vperm.xlu0 %1018, %v828
        %v1020 = vpop.permute.xlu0 %1019
        %1021 = vset.pattern.permute.xlu0 0
        %1022 = vperm.xlu0 %1021, %v829
        %v1023 = vpop.permute.xlu0 %1022
        %1024 = vset.pattern.permute.xlu0 0
        %1025 = vperm.xlu0 %1024, %v830
        %v1026 = vpop.permute.xlu0 %1025
        %1027 = vset.pattern.permute.xlu0 0
        %1028 = vperm.xlu0 %1027, %v831
        %v1029 = vpop.permute.xlu0 %1028
        %1030 = vset.pattern.permute.xlu0 0
        %1031 = vperm.xlu0 %1030, %v832
        %v1032 = vpop.permute.xlu0 %1031
        %1033 = vset.pattern.permute.xlu0 0
        %1034 = vperm.xlu0 %1033, %v833
        %v1035 = vpop.permute.xlu0 %1034
        %1036 = vset.pattern.permute.xlu0 0
        %1037 = vperm.xlu0 %1036, %v834
        %v1038 = vpop.permute.xlu0 %1037
        %1039 = vset.pattern.permute.xlu0 0
        %1040 = vperm.xlu0 %1039, %v835
        %v1041 = vpop.permute.xlu0 %1040
        %1042 = vset.pattern.permute.xlu0 0
        %1043 = vperm.xlu0 %1042, %v836
        %v1044 = vpop.permute.xlu0 %1043
        %1045 = vset.pattern.permute.xlu0 0
        %1046 = vperm.xlu0 %1045, %v837
        %v1047 = vpop.permute.xlu0 %1046
        %1048 = vset.pattern.permute.xlu0 0
        %1049 = vperm.xlu0 %1048, %v838
        %v1050 = vpop.permute.xlu0 %1049
        %1051 = vset.pattern.permute.xlu0 0
        %1052 = vperm.xlu0 %1051, %v839
        %v1053 = vpop.permute.xlu0 %1052
        %1054 = vset.pattern.permute.xlu0 0
        %1055 = vperm.xlu0 %1054, %v840
        %v1056 = vpop.permute.xlu0 %1055
        %1057 = vset.pattern.permute.xlu0 0
        %1058 = vperm.xlu0 %1057, %v841
        %v1059 = vpop.permute.xlu0 %1058
        %1060 = vset.pattern.permute.xlu0 0
        %1061 = vperm.xlu0 %1060, %v842
        %v1062 = vpop.permute.xlu0 %1061
        %1063 = vset.pattern.permute.xlu0 0
        %1064 = vperm.xlu0 %1063, %v843
        %v1065 = vpop.permute.xlu0 %1064
        %1066 = vset.pattern.permute.xlu0 0
        %1067 = vperm.xlu0 %1066, %v844
        %v1068 = vpop.permute.xlu0 %1067
        %1069 = vset.pattern.permute.xlu0 0
        %1070 = vperm.xlu0 %1069, %v845
        %v1071 = vpop.permute.xlu0 %1070
        %1072 = vset.pattern.permute.xlu0 0
        %1073 = vperm.xlu0 %1072, %v846
        %v1074 = vpop.permute.xlu0 %1073
        %1075 = vset.pattern.permute.xlu0 0
        %1076 = vperm.xlu0 %1075, %v847
        %v1077 = vpop.permute.xlu0 %1076
        %1078 = vset.pattern.permute.xlu0 0
        %1079 = vperm.xlu0 %1078, %v848
        %v1080 = vpop.permute.xlu0 %1079
        %1081 = vset.pattern.permute.xlu0 0
        %1082 = vperm.xlu0 %1081, %v849
        %v1083 = vpop.permute.xlu0 %1082
        %1084 = vset.pattern.permute.xlu0 0
        %1085 = vperm.xlu0 %1084, %v850
        %v1086 = vpop.permute.xlu0 %1085
        %1087 = vset.pattern.permute.xlu0 0
        %1088 = vperm.xlu0 %1087, %v851
        %v1089 = vpop.permute.xlu0 %1088
        %1090 = vset.pattern.permute.xlu0 0
        %1091 = vperm.xlu0 %1090, %v852
        %v1092 = vpop.permute.xlu0 %1091
        %1093 = vset.pattern.permute.xlu0 0
        %1094 = vperm.xlu0 %1093, %v853
        %v1095 = vpop.permute.xlu0 %1094
        %1096 = vset.pattern.permute.xlu0 0
        %1097 = vperm.xlu0 %1096, %v854
        %v1098 = vpop.permute.xlu0 %1097
        %1099 = vset.pattern.permute.xlu0 0
        %1100 = vperm.xlu0 %1099, %v855
        %v1101 = vpop.permute.xlu0 %1100
        %1102 = vset.pattern.permute.xlu0 0
        %1103 = vperm.xlu0 %1102, %v856
        %v1104 = vpop.permute.xlu0 %1103
        %1105 = vset.pattern.permute.xlu0 0
        %1106 = vperm.xlu0 %1105, %v857
        %v1107 = vpop.permute.xlu0 %1106
        %1108 = vset.pattern.permute.xlu0 0
        %1109 = vperm.xlu0 %1108, %v858
        %v1110 = vpop.permute.xlu0 %1109
        %1111 = vset.pattern.permute.xlu0 0
        %1112 = vperm.xlu0 %1111, %v859
        %v1113 = vpop.permute.xlu0 %1112
        %1114 = vset.pattern.permute.xlu0 0
        %1115 = vperm.xlu0 %1114, %v860
        %v1116 = vpop.permute.xlu0 %1115
        %v1117 = vlaneseq
        %v1118 = vshrl.u32 %v1117, 7
        %v1119 = vsub.s32 %v425, %v1118
        %v1120 = vrot.slane %v927, %v1119
        %v1121 = vlaneseq
        %v1122 = vshrl.u32 %v1121, 7
        %v1123 = vsub.s32 %v425, %v1122
        %v1124 = vrot.slane %v930, %v1123
        %v1125 = vlaneseq
        %v1126 = vshrl.u32 %v1125, 7
        %v1127 = vsub.s32 %v425, %v1126
        %v1128 = vrot.slane %v933, %v1127
        %v1129 = vlaneseq
        %v1130 = vshrl.u32 %v1129, 7
        %v1131 = vsub.s32 %v425, %v1130
        %v1132 = vrot.slane %v936, %v1131
        %v1133 = vlaneseq
        %v1134 = vshrl.u32 %v1133, 7
        %v1135 = vsub.s32 %v425, %v1134
        %v1136 = vrot.slane %v939, %v1135
        %v1137 = vlaneseq
        %v1138 = vshrl.u32 %v1137, 7
        %v1139 = vsub.s32 %v425, %v1138
        %v1140 = vrot.slane %v942, %v1139
        %v1141 = vlaneseq
        %v1142 = vshrl.u32 %v1141, 7
        %v1143 = vsub.s32 %v425, %v1142
        %v1144 = vrot.slane %v945, %v1143
        %v1145 = vlaneseq
        %v1146 = vshrl.u32 %v1145, 7
        %v1147 = vsub.s32 %v425, %v1146
        %v1148 = vrot.slane %v948, %v1147
        %v1149 = vlaneseq
        %v1150 = vshrl.u32 %v1149, 7
        %v1151 = vsub.s32 %v425, %v1150
        %v1152 = vrot.slane %v951, %v1151
        %v1153 = vlaneseq
        %v1154 = vshrl.u32 %v1153, 7
        %v1155 = vsub.s32 %v425, %v1154
        %v1156 = vrot.slane %v954, %v1155
        %v1157 = vlaneseq
        %v1158 = vshrl.u32 %v1157, 7
        %v1159 = vsub.s32 %v425, %v1158
        %v1160 = vrot.slane %v957, %v1159
        %v1161 = vlaneseq
        %v1162 = vshrl.u32 %v1161, 7
        %v1163 = vsub.s32 %v425, %v1162
        %v1164 = vrot.slane %v960, %v1163
        %v1165 = vlaneseq
        %v1166 = vshrl.u32 %v1165, 7
        %v1167 = vsub.s32 %v425, %v1166
        %v1168 = vrot.slane %v963, %v1167
        %v1169 = vlaneseq
        %v1170 = vshrl.u32 %v1169, 7
        %v1171 = vsub.s32 %v425, %v1170
        %v1172 = vrot.slane %v966, %v1171
        %v1173 = vlaneseq
        %v1174 = vshrl.u32 %v1173, 7
        %v1175 = vsub.s32 %v425, %v1174
        %v1176 = vrot.slane %v969, %v1175
        %v1177 = vlaneseq
        %v1178 = vshrl.u32 %v1177, 7
        %v1179 = vsub.s32 %v425, %v1178
        %v1180 = vrot.slane %v972, %v1179
        %v1181 = vlaneseq
        %v1182 = vshrl.u32 %v1181, 7
        %v1183 = vsub.s32 %v425, %v1182
        %v1184 = vrot.slane %v975, %v1183
        %v1185 = vlaneseq
        %v1186 = vshrl.u32 %v1185, 7
        %v1187 = vsub.s32 %v425, %v1186
        %v1188 = vrot.slane %v978, %v1187
        %v1189 = vlaneseq
        %v1190 = vshrl.u32 %v1189, 7
        %v1191 = vsub.s32 %v425, %v1190
        %v1192 = vrot.slane %v981, %v1191
        %v1193 = vlaneseq
        %v1194 = vshrl.u32 %v1193, 7
        %v1195 = vsub.s32 %v425, %v1194
        %v1196 = vrot.slane %v984, %v1195
        %v1197 = vlaneseq
        %v1198 = vshrl.u32 %v1197, 7
        %v1199 = vsub.s32 %v425, %v1198
        %v1200 = vrot.slane %v987, %v1199
        %v1201 = vlaneseq
        %v1202 = vshrl.u32 %v1201, 7
        %v1203 = vsub.s32 %v425, %v1202
        %v1204 = vrot.slane %v990, %v1203
        %v1205 = vlaneseq
        %v1206 = vshrl.u32 %v1205, 7
        %v1207 = vsub.s32 %v425, %v1206
        %v1208 = vrot.slane %v993, %v1207
        %v1209 = vlaneseq
        %v1210 = vshrl.u32 %v1209, 7
        %v1211 = vsub.s32 %v425, %v1210
        %v1212 = vrot.slane %v996, %v1211
        %v1213 = vlaneseq
        %v1214 = vshrl.u32 %v1213, 7
        %v1215 = vsub.s32 %v425, %v1214
        %v1216 = vrot.slane %v999, %v1215
        %v1217 = vlaneseq
        %v1218 = vshrl.u32 %v1217, 7
        %v1219 = vsub.s32 %v425, %v1218
        %v1220 = vrot.slane %v1002, %v1219
        %v1221 = vlaneseq
        %v1222 = vshrl.u32 %v1221, 7
        %v1223 = vsub.s32 %v425, %v1222
        %v1224 = vrot.slane %v1005, %v1223
        %v1225 = vlaneseq
        %v1226 = vshrl.u32 %v1225, 7
        %v1227 = vsub.s32 %v425, %v1226
        %v1228 = vrot.slane %v1008, %v1227
        %v1229 = vlaneseq
        %v1230 = vshrl.u32 %v1229, 7
        %v1231 = vsub.s32 %v425, %v1230
        %v1232 = vrot.slane %v1011, %v1231
        %v1233 = vlaneseq
        %v1234 = vshrl.u32 %v1233, 7
        %v1235 = vsub.s32 %v425, %v1234
        %v1236 = vrot.slane %v1014, %v1235
        %v1237 = vlaneseq
        %v1238 = vshrl.u32 %v1237, 7
        %v1239 = vsub.s32 %v425, %v1238
        %v1240 = vrot.slane %v1017, %v1239
        %v1241 = vlaneseq
        %v1242 = vshrl.u32 %v1241, 7
        %v1243 = vsub.s32 %v425, %v1242
        %v1244 = vrot.slane %v1020, %v1243
        %v1245 = vlaneseq
        %v1246 = vshrl.u32 %v1245, 7
        %v1247 = vsub.s32 %v425, %v1246
        %v1248 = vrot.slane %v1023, %v1247
        %v1249 = vlaneseq
        %v1250 = vshrl.u32 %v1249, 7
        %v1251 = vsub.s32 %v425, %v1250
        %v1252 = vrot.slane %v1026, %v1251
        %v1253 = vlaneseq
        %v1254 = vshrl.u32 %v1253, 7
        %v1255 = vsub.s32 %v425, %v1254
        %v1256 = vrot.slane %v1029, %v1255
        %v1257 = vlaneseq
        %v1258 = vshrl.u32 %v1257, 7
        %v1259 = vsub.s32 %v425, %v1258
        %v1260 = vrot.slane %v1032, %v1259
        %v1261 = vlaneseq
        %v1262 = vshrl.u32 %v1261, 7
        %v1263 = vsub.s32 %v425, %v1262
        %v1264 = vrot.slane %v1035, %v1263
        %v1265 = vlaneseq
        %v1266 = vshrl.u32 %v1265, 7
        %v1267 = vsub.s32 %v425, %v1266
        %v1268 = vrot.slane %v1038, %v1267
        %v1269 = vlaneseq
        %v1270 = vshrl.u32 %v1269, 7
        %v1271 = vsub.s32 %v425, %v1270
        %v1272 = vrot.slane %v1041, %v1271
        %v1273 = vlaneseq
        %v1274 = vshrl.u32 %v1273, 7
        %v1275 = vsub.s32 %v425, %v1274
        %v1276 = vrot.slane %v1044, %v1275
        %v1277 = vlaneseq
        %v1278 = vshrl.u32 %v1277, 7
        %v1279 = vsub.s32 %v425, %v1278
        %v1280 = vrot.slane %v1047, %v1279
        %v1281 = vlaneseq
        %v1282 = vshrl.u32 %v1281, 7
        %v1283 = vsub.s32 %v425, %v1282
        %v1284 = vrot.slane %v1050, %v1283
        %v1285 = vlaneseq
        %v1286 = vshrl.u32 %v1285, 7
        %v1287 = vsub.s32 %v425, %v1286
        %v1288 = vrot.slane %v1053, %v1287
        %v1289 = vlaneseq
        %v1290 = vshrl.u32 %v1289, 7
        %v1291 = vsub.s32 %v425, %v1290
        %v1292 = vrot.slane %v1056, %v1291
        %v1293 = vlaneseq
        %v1294 = vshrl.u32 %v1293, 7
        %v1295 = vsub.s32 %v425, %v1294
        %v1296 = vrot.slane %v1059, %v1295
        %v1297 = vlaneseq
        %v1298 = vshrl.u32 %v1297, 7
        %v1299 = vsub.s32 %v425, %v1298
        %v1300 = vrot.slane %v1062, %v1299
        %v1301 = vlaneseq
        %v1302 = vshrl.u32 %v1301, 7
        %v1303 = vsub.s32 %v425, %v1302
        %v1304 = vrot.slane %v1065, %v1303
        %v1305 = vlaneseq
        %v1306 = vshrl.u32 %v1305, 7
        %v1307 = vsub.s32 %v425, %v1306
        %v1308 = vrot.slane %v1068, %v1307
        %v1309 = vlaneseq
        %v1310 = vshrl.u32 %v1309, 7
        %v1311 = vsub.s32 %v425, %v1310
        %v1312 = vrot.slane %v1071, %v1311
        %v1313 = vlaneseq
        %v1314 = vshrl.u32 %v1313, 7
        %v1315 = vsub.s32 %v425, %v1314
        %v1316 = vrot.slane %v1074, %v1315
        %v1317 = vlaneseq
        %v1318 = vshrl.u32 %v1317, 7
        %v1319 = vsub.s32 %v425, %v1318
        %v1320 = vrot.slane %v1077, %v1319
        %v1321 = vlaneseq
        %v1322 = vshrl.u32 %v1321, 7
        %v1323 = vsub.s32 %v425, %v1322
        %v1324 = vrot.slane %v1080, %v1323
        %v1325 = vlaneseq
        %v1326 = vshrl.u32 %v1325, 7
        %v1327 = vsub.s32 %v425, %v1326
        %v1328 = vrot.slane %v1083, %v1327
        %v1329 = vlaneseq
        %v1330 = vshrl.u32 %v1329, 7
        %v1331 = vsub.s32 %v425, %v1330
        %v1332 = vrot.slane %v1086, %v1331
        %v1333 = vlaneseq
        %v1334 = vshrl.u32 %v1333, 7
        %v1335 = vsub.s32 %v425, %v1334
        %v1336 = vrot.slane %v1089, %v1335
        %v1337 = vlaneseq
        %v1338 = vshrl.u32 %v1337, 7
        %v1339 = vsub.s32 %v425, %v1338
        %v1340 = vrot.slane %v1092, %v1339
        %v1341 = vlaneseq
        %v1342 = vshrl.u32 %v1341, 7
        %v1343 = vsub.s32 %v425, %v1342
        %v1344 = vrot.slane %v1095, %v1343
        %v1345 = vlaneseq
        %v1346 = vshrl.u32 %v1345, 7
        %v1347 = vsub.s32 %v425, %v1346
        %v1348 = vrot.slane %v1098, %v1347
        %v1349 = vlaneseq
        %v1350 = vshrl.u32 %v1349, 7
        %v1351 = vsub.s32 %v425, %v1350
        %v1352 = vrot.slane %v1101, %v1351
        %v1353 = vlaneseq
        %v1354 = vshrl.u32 %v1353, 7
        %v1355 = vsub.s32 %v425, %v1354
        %v1356 = vrot.slane %v1104, %v1355
        %v1357 = vlaneseq
        %v1358 = vshrl.u32 %v1357, 7
        %v1359 = vsub.s32 %v425, %v1358
        %v1360 = vrot.slane %v1107, %v1359
        %v1361 = vlaneseq
        %v1362 = vshrl.u32 %v1361, 7
        %v1363 = vsub.s32 %v425, %v1362
        %v1364 = vrot.slane %v1110, %v1363
        %v1365 = vlaneseq
        %v1366 = vshrl.u32 %v1365, 7
        %v1367 = vsub.s32 %v425, %v1366
        %v1368 = vrot.slane %v1113, %v1367
        %v1369 = vlaneseq
        %v1370 = vshrl.u32 %v1369, 7
        %v1371 = vsub.s32 %v425, %v1370
        %v1372 = vrot.slane %v1116, %v1371
        %v1373 = vsel %vm508, %v1124, %v1120
        %vm1374 = vcmask 1042434
        %v1375 = vsel %vm1374, %v1128, %v1373
        %vm1376 = vcmask 1043459
        %v1377 = vsel %vm1376, %v1132, %v1375
        %vm1378 = vcmask 1044484
        %v1379 = vsel %vm1378, %v1136, %v1377
        %vm1380 = vcmask 1045509
        %v1381 = vsel %vm1380, %v1140, %v1379
        %vm1382 = vcmask 1046534
        %v1383 = vsel %vm1382, %v1144, %v1381
        %vm1384 = vcmask 1047559
        %v1385 = vsel %vm1384, %v1148, %v1383
        %v1386 = vsel %vm508, %v1156, %v1152
        %v1387 = vsel %vm1374, %v1160, %v1386
        %v1388 = vsel %vm1376, %v1164, %v1387
        %v1389 = vsel %vm1378, %v1168, %v1388
        %v1390 = vsel %vm1380, %v1172, %v1389
        %v1391 = vsel %vm1382, %v1176, %v1390
        %v1392 = vsel %vm1384, %v1180, %v1391
        %v1393 = vsel %vm508, %v1188, %v1184
        %v1394 = vsel %vm1374, %v1192, %v1393
        %v1395 = vsel %vm1376, %v1196, %v1394
        %v1396 = vsel %vm1378, %v1200, %v1395
        %v1397 = vsel %vm1380, %v1204, %v1396
        %v1398 = vsel %vm1382, %v1208, %v1397
        %v1399 = vsel %vm1384, %v1212, %v1398
        %v1400 = vsel %vm508, %v1220, %v1216
        %v1401 = vsel %vm1374, %v1224, %v1400
        %v1402 = vsel %vm1376, %v1228, %v1401
        %v1403 = vsel %vm1378, %v1232, %v1402
        %v1404 = vsel %vm1380, %v1236, %v1403
        %v1405 = vsel %vm1382, %v1240, %v1404
        %v1406 = vsel %vm1384, %v1244, %v1405
        %v1407 = vsel %vm508, %v1252, %v1248
        %v1408 = vsel %vm1374, %v1256, %v1407
        %v1409 = vsel %vm1376, %v1260, %v1408
        %v1410 = vsel %vm1378, %v1264, %v1409
        %v1411 = vsel %vm1380, %v1268, %v1410
        %v1412 = vsel %vm1382, %v1272, %v1411
        %v1413 = vsel %vm1384, %v1276, %v1412
        %v1414 = vsel %vm508, %v1284, %v1280
        %v1415 = vsel %vm1374, %v1288, %v1414
        %v1416 = vsel %vm1376, %v1292, %v1415
        %v1417 = vsel %vm1378, %v1296, %v1416
        %v1418 = vsel %vm1380, %v1300, %v1417
        %v1419 = vsel %vm1382, %v1304, %v1418
        %v1420 = vsel %vm1384, %v1308, %v1419
        %v1421 = vsel %vm508, %v1316, %v1312
        %v1422 = vsel %vm1374, %v1320, %v1421
        %v1423 = vsel %vm1376, %v1324, %v1422
        %v1424 = vsel %vm1378, %v1328, %v1423
        %v1425 = vsel %vm1380, %v1332, %v1424
        %v1426 = vsel %vm1382, %v1336, %v1425
        %v1427 = vsel %vm1384, %v1340, %v1426
        %v1428 = vsel %vm508, %v1348, %v1344
        %v1429 = vsel %vm1374, %v1352, %v1428
        %v1430 = vsel %vm1376, %v1356, %v1429
        %v1431 = vsel %vm1378, %v1360, %v1430
        %v1432 = vsel %vm1380, %v1364, %v1431
        %v1433 = vsel %vm1382, %v1368, %v1432
        %v1434 = vsel %vm1384, %v1372, %v1433
        %vm1443 = vcmask 15360
        %v1444 = vsel %vm1443, %v1385, 0.0
        %1445 = vadd.xlane.f32.xlu0 %v1444
        %v1446 = vpop.xlane.xlu0 %1445
        %v1447 = vsel %vm1443, %v1392, 0.0
        %1448 = vadd.xlane.f32.xlu0 %v1447
        %v1449 = vpop.xlane.xlu0 %1448
        %v1450 = vsel %vm1443, %v1399, 0.0
        %1451 = vadd.xlane.f32.xlu0 %v1450
        %v1452 = vpop.xlane.xlu0 %1451
        %v1453 = vsel %vm1443, %v1406, 0.0
        %1454 = vadd.xlane.f32.xlu0 %v1453
        %v1455 = vpop.xlane.xlu0 %1454
        %v1456 = vsel %vm1443, %v1413, 0.0
        %1457 = vadd.xlane.f32.xlu0 %v1456
        %v1458 = vpop.xlane.xlu0 %1457
        %v1459 = vsel %vm1443, %v1420, 0.0
        %1460 = vadd.xlane.f32.xlu0 %v1459
        %v1461 = vpop.xlane.xlu0 %1460
        %v1462 = vsel %vm1443, %v1427, 0.0
        %1463 = vadd.xlane.f32.xlu0 %v1462
        %v1464 = vpop.xlane.xlu0 %1463
        %v1465 = vsel %vm1443, %v1434, 0.0
        %1466 = vadd.xlane.f32.xlu0 %v1465
        %v1467 = vpop.xlane.xlu0 %1466
        %v1469 = vlaneseq
        %v1470 = vshrl.u32 %v1469, 7
        %v1471 = vsub.s32 0, %v1470
        %v1472 = vrot.slane %v295, %v1471
        %1474 = vbcast.lane.b32.xlu0 %v1472, 256
        %v1475 = vpop.permute.xlu0 %1474
        %s1477 = sor.u32 256, 8
        %1478 = vbcast.lane.b32.xlu0 %v1472, %s1477
        %v1479 = vpop.permute.xlu0 %1478
        %s1481 = sor.u32 256, 16
        %1482 = vbcast.lane.b32.xlu0 %v1472, %s1481
        %v1483 = vpop.permute.xlu0 %1482
        %s1485 = sor.u32 256, 24
        %1486 = vbcast.lane.b32.xlu0 %v1472, %s1485
        %v1487 = vpop.permute.xlu0 %1486
        %v1492 = vadd.f32 %v1446, %v1475
        %v1493 = vadd.f32 %v1449, %v1479
        %v1494 = vadd.f32 %v1452, %v1483
        %v1495 = vadd.f32 %v1455, %v1487
        %v1496 = vadd.f32 %v1458, %v1475
        %v1497 = vadd.f32 %v1461, %v1479
        %v1498 = vadd.f32 %v1464, %v1483
        %v1499 = vadd.f32 %v1467, %v1487
        %v1500 = vxor.u32 %v1492, 2147483648
        %v1501 = vxor.u32 %v1493, 2147483648
        %v1502 = vxor.u32 %v1494, 2147483648
        %v1503 = vxor.u32 %v1495, 2147483648
        %v1504 = vxor.u32 %v1496, 2147483648
        %v1505 = vxor.u32 %v1497, 2147483648
        %v1506 = vxor.u32 %v1498, 2147483648
        %v1507 = vxor.u32 %v1499, 2147483648
        %v1508 = vmul.f32 %v1500, 1.442695
        %v1509 = vpow.pop %v1508
        %v1510 = vmul.f32 %v1501, 1.442695
        %v1511 = vpow.pop %v1510
        %v1512 = vmul.f32 %v1502, 1.442695
        %v1513 = vpow.pop %v1512
        %v1514 = vmul.f32 %v1503, 1.442695
        %v1515 = vpow.pop %v1514
        %v1516 = vmul.f32 %v1504, 1.442695
        %v1517 = vpow.pop %v1516
        %v1518 = vmul.f32 %v1505, 1.442695
        %v1519 = vpow.pop %v1518
        %v1520 = vmul.f32 %v1506, 1.442695
        %v1521 = vpow.pop %v1520
        %v1522 = vmul.f32 %v1507, 1.442695
        %v1523 = vpow.pop %v1522
        %v1524 = vadd.f32 %v1509, 1.0
        %v1525 = vadd.f32 %v1511, 1.0
        %v1526 = vadd.f32 %v1513, 1.0
        %v1527 = vadd.f32 %v1515, 1.0
        %v1528 = vadd.f32 %v1517, 1.0
        %v1529 = vadd.f32 %v1519, 1.0
        %v1530 = vadd.f32 %v1521, 1.0
        %v1531 = vadd.f32 %v1523, 1.0
        %v1532 = vrcp.pop %v1524
        %v1533 = vmul.f32 1.0, %v1532
        %v1534 = vrcp.pop %v1525
        %v1535 = vmul.f32 1.0, %v1534
        %v1536 = vrcp.pop %v1526
        %v1537 = vmul.f32 1.0, %v1536
        %v1538 = vrcp.pop %v1527
        %v1539 = vmul.f32 1.0, %v1538
        %v1540 = vrcp.pop %v1528
        %v1541 = vmul.f32 1.0, %v1540
        %v1542 = vrcp.pop %v1529
        %v1543 = vmul.f32 1.0, %v1542
        %v1544 = vrcp.pop %v1530
        %v1545 = vmul.f32 1.0, %v1544
        %v1546 = vrcp.pop %v1531
        %v1547 = vmul.f32 1.0, %v1546
        %1549 = vset.pattern.permute.xlu0 0
        %1550 = vperm.xlu0 %1549, %v1533
        %v1551 = vpop.permute.xlu0 %1550
        %1554 = vset.pattern.permute.xlu0 0
        %1555 = vperm.xlu0 %1554, %v1535
        %v1556 = vpop.permute.xlu0 %1555
        %1559 = vset.pattern.permute.xlu0 0
        %1560 = vperm.xlu0 %1559, %v1537
        %v1561 = vpop.permute.xlu0 %1560
        %1564 = vset.pattern.permute.xlu0 0
        %1565 = vperm.xlu0 %1564, %v1539
        %v1566 = vpop.permute.xlu0 %1565
        %1569 = vset.pattern.permute.xlu0 0
        %1570 = vperm.xlu0 %1569, %v1541
        %v1571 = vpop.permute.xlu0 %1570
        %1574 = vset.pattern.permute.xlu0 0
        %1575 = vperm.xlu0 %1574, %v1543
        %v1576 = vpop.permute.xlu0 %1575
        %1579 = vset.pattern.permute.xlu0 0
        %1580 = vperm.xlu0 %1579, %v1545
        %v1581 = vpop.permute.xlu0 %1580
        %1584 = vset.pattern.permute.xlu0 0
        %1585 = vperm.xlu0 %1584, %v1547
        %v1586 = vpop.permute.xlu0 %1585
        %v1588 = vmul.f32 %v246, %v1551
        %v1589 = vmul.f32 %v247, %v1551
        %v1590 = vmul.f32 %v248, %v1556
        %v1591 = vmul.f32 %v249, %v1556
        %v1592 = vmul.f32 %v250, %v1561
        %v1593 = vmul.f32 %v251, %v1561
        %v1594 = vmul.f32 %v252, %v1566
        %v1595 = vmul.f32 %v253, %v1566
        %v1596 = vmul.f32 %v254, %v1571
        %v1597 = vmul.f32 %v255, %v1571
        %v1598 = vmul.f32 %v256, %v1576
        %v1599 = vmul.f32 %v257, %v1576
        %v1600 = vmul.f32 %v258, %v1581
        %v1601 = vmul.f32 %v259, %v1581
        %v1602 = vmul.f32 %v260, %v1586
        %v1603 = vmul.f32 %v261, %v1586
        %1604 = vst [vmem:[%s243] sm:$0xff] %v1588
        %1605 = vst [vmem:[%s243 + $0x8] sm:$0xff] %v1589
        %1606 = vst [vmem:[%s243 + $0x10] sm:$0xff] %v1590
        %1607 = vst [vmem:[%s243 + $0x18] sm:$0xff] %v1591
        %1608 = vst [vmem:[%s243 + $0x20] sm:$0xff] %v1592
        %1609 = vst [vmem:[%s243 + $0x28] sm:$0xff] %v1593
        %1610 = vst [vmem:[%s243 + $0x30] sm:$0xff] %v1594
        %1611 = vst [vmem:[%s243 + $0x38] sm:$0xff] %v1595
        %1612 = vst [vmem:[%s243 + $0x40] sm:$0xff] %v1596
        %1613 = vst [vmem:[%s243 + $0x48] sm:$0xff] %v1597
        %1614 = vst [vmem:[%s243 + $0x50] sm:$0xff] %v1598
        %1615 = vst [vmem:[%s243 + $0x58] sm:$0xff] %v1599
        %1616 = vst [vmem:[%s243 + $0x60] sm:$0xff] %v1600
        %1617 = vst [vmem:[%s243 + $0x68] sm:$0xff] %v1601
        %1618 = vst [vmem:[%s243 + $0x70] sm:$0xff] %v1602
        %1619 = vst [vmem:[%s243 + $0x78] sm:$0xff] %v1603
        %s1620 = sand.u32 %s140, 1
        %s1621 = scalar_lea.sflag [#allocation4], %s1620
        %s1622 = sand.u32 %s140, 1
        %s1623 = smul.addr %s1622, 128
        %s1624 = scalar_lea.vmem [#allocation5], %s1623
        // Predicated region
        $region45: #{tpu_custom_call.1} parent=39 // pred_check
          %p1625 = pneg %p150
        $region46: #{tpu_custom_call.1} parent=39 // pred_check_branch
          %1627 = sbr.rel (%p1625) target = $region48
        $region47: #{tpu_custom_call.1} parent=39 // pred_region
          %s1628 = smul.u32 2, %s22
          %s1630 = ssub.s32 2048, 2048
          %1631 = vsyncadd %s1621, %s1630
          %s1632 = smul.addr %s1628, 8
          %s1633 = smul.addr %s1632, 128
          %s1634 = scalar_lea.hbm %s5, %s1633
          %s1635 = sshll.u32 %s1624, 4
          %s1636 = int_to_ptr.vmem [resolvable:$true] %s1635
          %1641 = dma.vmem_to_hbm [thread:$0]  %s1636, 2048, %s1634, %s1621, 256, 256, 16
        $region48: #{tpu_custom_call.1} parent=39 // pred_fallthru
          _
      $region40: #{tpu_custom_call.1} parent=5 // pred_fallthru
        _
      %p1642 = scmp.le.s32.totalorder 2, %s17
      // Predicated region
      $region49: #{tpu_custom_call.1} parent=5 // pred_check
        %p1643 = pneg %p1642
      $region50: #{tpu_custom_call.1} parent=5 // pred_check_branch
        %1645 = sbr.rel (%p1643) target = $region52
      $region51: #{tpu_custom_call.1} parent=5 // pred_region
        %s1646 = ssub.s32 %s17, 2
        // Predicated region
        $region53: #{tpu_custom_call.1} parent=51 // pred_check
          %p1647 = pneg %p156
        $region54: #{tpu_custom_call.1} parent=51 // pred_check_branch
          %1649 = sbr.rel (%p1647) target = $region56
        $region55: #{tpu_custom_call.1} parent=51 // pred_region
          %s1650 = sand.u32 %s141, 1
          %s1651 = scalar_lea.sflag [#allocation4], %s1650
          %s1652 = sand.u32 %s141, 1
          %s1653 = smul.addr %s1652, 128
          %s1654 = scalar_lea.vmem [#allocation5], %s1653
          %1655 = dma.done %s1651, 2048
        $region56: #{tpu_custom_call.1} parent=51 // pred_fallthru
          _
      $region52: #{tpu_custom_call.1} parent=5 // pred_fallthru
        _
    $region6: #{tpu_custom_call.1} parent=1 // loop_footer
      %s21 = sadd.s32 1, %s17
    $region7: #{tpu_custom_call.1} parent=1 // loop_footer_branch
      %16 = sbr.rel target = $region3
    $region8: #{tpu_custom_call.1} parent=1 // loop_exit
      _
    %1656 = vsyncpa [#allocation3], 1
    %s1657 = scalar_lea.sflag [#allocation3], 1
    %1658 = vsyncpa %s1657, 1
    %1659 = vsyncpa [#allocation4], 1
    %s1660 = scalar_lea.sflag [#allocation4], 1
    %1661 = vsyncpa %s1660, 1

</llo_original>
